<compile_context>
chip_gen: v5e
topology: v5e:2x2
jax: 0.10.0
libtpu: 0.0.40
codegen_flags: <defaults>
</compile_context>

<pallas_src>
import functools

import jax
import jax.numpy as jnp
from jax.experimental import pallas as pl
from jax.experimental.pallas import tpu as pltpu

_LANE = 128
_EPS = 1e-8


def _diversity_kernel(p_ref, out_ref, *, ensemble_size):
    # p_ref:   [M, TR, 128] slice of the padded probability tensor (native dtype).
    # out_ref: [1, 8, 128] f32 per-slice accumulator, resident across the inner
    #          ("arbitrary") grid axis (index_map constant in the inner index).
    @pl.when(pl.program_id(1) == 0)
    def _init():
        out_ref[...] = jnp.zeros_like(out_ref)

    p = p_ref[...].astype(jnp.float32) + _EPS            # [M, TR, 128]  (upcast, then eps)
    logp = jnp.log(p)                                    # EUP

    trace = jnp.sum(p * logp, axis=0)                    # [TR, 128]  VPU adds over M
    col_p = jnp.sum(p, axis=0)                           # [TR, 128]
    col_l = jnp.sum(logp, axis=0)                        # [TR, 128]
    part = float(ensemble_size) * trace - col_p * col_l  # [TR, 128]

    # Fold TR rows into 8 sublanes with plain vreg adds (no XLU in the loop).
    tr = part.shape[0]
    part8 = part.reshape(tr // 8, 8, _LANE).sum(axis=0)  # [8, 128]
    out_ref[...] = out_ref[...] + part8.reshape(1, 8, _LANE)


def diversity_loss(individual_probs: jax.Array, *,
                   block_bytes: int = 4 * 1024 * 1024,
                   num_slices: int = 2) -> jax.Array:
    """individual_probs: [ensemble_size, batch_size, num_classes] -> scalar f32 loss."""
    M, B, C = individual_probs.shape
    if M <= 1:
        return jnp.float32(0.0)

    BC = B * C
    rows = pl.cdiv(BC, _LANE)

    # Size tiles by bytes (f32-equivalent so bf16 inputs don't blow up temporaries).
    bytes_per_row_f32 = M * _LANE * 4
    tr_target = max(16, (block_bytes // bytes_per_row_f32) // 16 * 16)
    g_total = max(num_slices, pl.cdiv(rows, tr_target))
    g_total = pl.cdiv(g_total, num_slices) * num_slices       # same #steps per slice
    tr = pl.cdiv(max(16, pl.cdiv(rows, g_total)), 16) * 16    # multiple of 16 rows
    rows_padded = g_total * tr
    g_inner = g_total // num_slices

    # Flatten lane axis; pad with 1.0 -> exactly-zero contribution per padded lane
    # (in f32: 1.0 + 1e-8 == 1.0 and log(1.0) == 0), so no in-kernel mask is needed.
    p_flat = individual_probs.reshape(M, BC)
    if rows_padded * _LANE != BC:
        p_flat = jnp.pad(p_flat, ((0, 0), (0, rows_padded * _LANE - BC)),
                         constant_values=1.0)
    p3 = p_flat.reshape(M, rows_padded, _LANE)

    kernel = functools.partial(_diversity_kernel, ensemble_size=M)
    partials = pl.pallas_call(
        kernel,
        out_shape=jax.ShapeDtypeStruct((num_slices, 8, _LANE), jnp.float32),
        grid=(num_slices, g_inner),
        in_specs=[pl.BlockSpec((M, tr, _LANE),
                               lambda s, k: (0, s * g_inner + k, 0))],
        out_specs=pl.BlockSpec((1, 8, _LANE), lambda s, k: (s, 0, 0)),
        compiler_params=pltpu.CompilerParams(
            dimension_semantics=("parallel", "arbitrary"),
            vmem_limit_bytes=32 * 1024 * 1024),
    )(p3)

    scale = -1.0 / (float(B) * M * (M - 1))   # batchmean (1/B) and -1/(M(M-1))
    return jnp.sum(partials) * scale


def _diversity_loss_ref(probs: jax.Array) -> jax.Array:
    """Plain-JAX transliteration of the PyTorch forward, for verification."""
    M, B, _ = probs.shape
    total = jnp.float32(0.0)
    for m in range(M):
        for mp in range(M):
            if m != mp:
                p_m = probs[m].astype(jnp.float32) + _EPS
                p_mp = probs[mp].astype(jnp.float32) + _EPS
                kl = jnp.sum(p_m * (jnp.log(p_m) - jnp.log(p_mp))) / B
                total = total + kl
    return -total / (M * (M - 1))


if __name__ == "__main__":
    key = jax.random.PRNGKey(0)

    # Test 1: small canonical shape [ensemble, batch, classes], f32.
    M, B, C = 4, 8, 16
    probs = jax.nn.softmax(jax.random.normal(key, (M, B, C), jnp.float32), axis=-1)
    out = jax.block_until_ready(diversity_loss(probs))
    ref = _diversity_loss_ref(probs)
    assert jnp.allclose(out, ref, atol=1e-5, rtol=1e-5), (out, ref)

    # Test 2: ragged lane extent (B*C = 259) -> exercises the 1.0-padding path.
    M2, B2, C2 = 5, 7, 37
    k2 = jax.random.fold_in(key, 1)
    probs2 = jax.nn.softmax(jax.random.normal(k2, (M2, B2, C2), jnp.float32), axis=-1)
    out2 = jax.block_until_ready(diversity_loss(probs2))
    ref2 = _diversity_loss_ref(probs2)
    assert jnp.allclose(out2, ref2, atol=1e-5, rtol=1e-5), (out2, ref2)

    # Test 3: multi-step inner grid + both parallel slices (small block_bytes).
    M3, B3, C3 = 3, 64, 130
    k3 = jax.random.fold_in(key, 2)
    probs3 = jax.nn.softmax(jax.random.normal(k3, (M3, B3, C3), jnp.float32), axis=-1)
    out3 = jax.block_until_ready(diversity_loss(probs3, block_bytes=48 * 1024))
    ref3 = _diversity_loss_ref(probs3)
    assert jnp.allclose(out3, ref3, atol=1e-5, rtol=1e-5), (out3, ref3)

    # Test 4: bf16 input (kernel upcasts after load; f32 accumulation).
    probs_bf16 = probs.astype(jnp.bfloat16)
    out4 = jax.block_until_ready(diversity_loss(probs_bf16))
    ref4 = _diversity_loss_ref(probs_bf16)
    assert jnp.allclose(out4, ref4, atol=1e-4, rtol=1e-4), (out4, ref4)

    print("KERNEL_OK")
</pallas_src>

<mosaic_0001>
module attributes {stable_mosaic.version = 11 : i64} {
  func.func @_diversity_kernel(%arg0: i32, %arg1: i32, %arg2: memref<4x16x128xf32, #tpu.memory_space<vmem>>, %arg3: memref<1x8x128xf32, #tpu.memory_space<vmem>>) attributes {dimension_semantics = [#tpu.dimension_semantics<parallel>, #tpu.dimension_semantics<arbitrary>], iteration_bounds = array<i64: 2, 1>, scalar_prefetch = 0 : i64, scratch_operands = 0 : i64, tpu.core_type = #tpu.core_type<tc>, window_params = [{transform_indices = @transform_0, window_bounds = array<i64: 4, 16, 128>}, {transform_indices = @transform_1, window_bounds = array<i64: 1, 8, 128>}]} {
    %c0_i32 = arith.constant 0 : i32
    %0 = arith.cmpi eq, %arg1, %c0_i32 : i32
    %1 = arith.extui %0 : i1 to i32
    %c0_i32_0 = arith.constant 0 : i32
    %2 = arith.cmpi ne, %1, %c0_i32_0 : i32
    scf.if %2 {
      %cst_14 = arith.constant 0.000000e+00 : f32
      %21 = vector.broadcast %cst_14 : f32 to vector<1x8x128xf32>
      %c0_15 = arith.constant 0 : index
      %c0_16 = arith.constant 0 : index
      %c0_17 = arith.constant 0 : index
      %22 = vector.load %arg3[%c0_15, %c0_16, %c0_17] : memref<1x8x128xf32, #tpu.memory_space<vmem>>, vector<1x8x128xf32>
      tpu.vector_store %arg3[%c0_15, %c0_16, %c0_17], %21 {strides = array<i32>} : memref<1x8x128xf32, #tpu.memory_space<vmem>>, vector<1x8x128xf32>,
    } else {
    }
    %c0 = arith.constant 0 : index
    %c0_1 = arith.constant 0 : index
    %c0_2 = arith.constant 0 : index
    %3 = vector.load %arg2[%c0, %c0_1, %c0_2] : memref<4x16x128xf32, #tpu.memory_space<vmem>>, vector<4x16x128xf32>
    %cst = arith.constant 9.99999993E-9 : f32
    %4 = vector.broadcast %cst : f32 to vector<4x16x128xf32>
    %5 = arith.addf %3, %4 : vector<4x16x128xf32>
    %6 = math.log %5 : vector<4x16x128xf32>
    %7 = arith.mulf %5, %6 : vector<4x16x128xf32>
    %cst_3 = arith.constant dense<0.000000e+00> : vector<16x128xf32>
    %8 = vector.multi_reduction <add>, %7, %cst_3 [0] : vector<4x16x128xf32> to vector<16x128xf32>
    %cst_4 = arith.constant dense<0.000000e+00> : vector<16x128xf32>
    %9 = vector.multi_reduction <add>, %5, %cst_4 [0] : vector<4x16x128xf32> to vector<16x128xf32>
    %cst_5 = arith.constant dense<0.000000e+00> : vector<16x128xf32>
    %10 = vector.multi_reduction <add>, %6, %cst_5 [0] : vector<4x16x128xf32> to vector<16x128xf32>
    %cst_6 = arith.constant 4.000000e+00 : f32
    %11 = vector.broadcast %cst_6 : f32 to vector<16x128xf32>
    %12 = arith.mulf %11, %8 : vector<16x128xf32>
    %13 = arith.mulf %9, %10 : vector<16x128xf32>
    %14 = arith.subf %12, %13 : vector<16x128xf32>
    %15 = vector.shape_cast %14 : vector<16x128xf32> to vector<2x8x128xf32>
    %cst_7 = arith.constant dense<0.000000e+00> : vector<8x128xf32>
    %16 = vector.multi_reduction <add>, %15, %cst_7 [0] : vector<2x8x128xf32> to vector<8x128xf32>
    %c0_8 = arith.constant 0 : index
    %c0_9 = arith.constant 0 : index
    %c0_10 = arith.constant 0 : index
    %17 = vector.load %arg3[%c0_8, %c0_9, %c0_10] : memref<1x8x128xf32, #tpu.memory_space<vmem>>, vector<1x8x128xf32>
    %18 = vector.shape_cast %16 : vector<8x128xf32> to vector<1x8x128xf32>
    %19 = arith.addf %17, %18 : vector<1x8x128xf32>
    %c0_11 = arith.constant 0 : index
    %c0_12 = arith.constant 0 : index
    %c0_13 = arith.constant 0 : index
    %20 = vector.load %arg3[%c0_11, %c0_12, %c0_13] : memref<1x8x128xf32, #tpu.memory_space<vmem>>, vector<1x8x128xf32>
    tpu.vector_store %arg3[%c0_11, %c0_12, %c0_13], %19 {strides = array<i32>} : memref<1x8x128xf32, #tpu.memory_space<vmem>>, vector<1x8x128xf32>,
    return
  }
  func.func @transform_0(%arg0: i32, %arg1: i32) -> (i32, i32, i32) {
    %c1_i32 = arith.constant 1 : i32
    %0 = arith.muli %arg0, %c1_i32 : i32
    %1 = arith.addi %0, %arg1 : i32
    %c0_i32 = arith.constant 0 : i32
    %c0_i32_0 = arith.constant 0 : i32
    %c0_i32_1 = arith.constant 0 : i32
    return %c0_i32, %1, %c0_i32_0 : i32, i32, i32
  }
  func.func @transform_1(%arg0: i32, %arg1: i32) -> (i32, i32, i32) {
    %c0_i32 = arith.constant 0 : i32
    %c0_i32_0 = arith.constant 0 : i32
    %c0_i32_1 = arith.constant 0 : i32
    return %arg0, %c0_i32, %c0_i32_0 : i32, i32, i32
  }
}

</mosaic_0001>

<llo_original>
// kernel: tpu_custom_call.1
$region0: #{tpu_custom_call.1}
  #allocation0 [shape = 'u32[]', space=smem, size = 0x4, offset = 0x4, fixed_abs, tag = 'smem constant byte address 0x4 - core index']
  #allocation1 [shape = 'u32[72,128]{1,0:T(1,128)}', space=vmem, size = 0x9000, scoped, tag = 'internal scratch']
  #allocation6 [shape = 's32[]', space=sflag, size = 0x4, offset = 0, fixed_abs, tag = 'sflag constant byte address 0x0 - dummy sync flag']
  %s0 = inlined_call_operand.hbm [shape: f32[4,32,128], index: 0, kind: input, shape index: {}]
  %s1 = inlined_call_operand.hbm [shape: f32[2,8,128], index: 1, kind: output, shape index: {}]
  %s2 = sld [smem:[#allocation0]]
  $region45: #{tpu_custom_call.1} parent=0
    _
  %s4 = ssub.s32 1, %s2
  %s5 = scalar_select 0, %s4, %s2
  $region1: #{tpu_custom_call.1} parent=0
    #allocation2 [shape = 'u8[65536]{0}', space=vmem, size = 0x10000, scoped, tag = 'input window, operand 0']
    #allocation3 [shape = 's32[2]{0}', space=sflag, size = 0x8, scoped, tag = 'scoped memory for tpu_custom_call.1']
    #allocation4 [shape = 's32[2]{0}', space=sflag, size = 0x8, scoped, tag = 'scoped memory for tpu_custom_call.1']
    #allocation5 [shape = 'u8[8192]{0}', space=vmem, size = 0x2000, scoped, tag = 'output window, operand 0']
    %6 = vsyncpa [#allocation3], 0
    %s7 = scalar_lea.sflag [#allocation3], 1
    %8 = vsyncpa %s7, 0
    %9 = vsyncpa [#allocation4], 0
    %s10 = scalar_lea.sflag [#allocation4], 1
    %11 = vsyncpa %s10, 0
    loop: start=0, step=1, limit=4
    $region2: #{tpu_custom_call.1} parent=1 // loop_pre_header
      _
    $region3: #{tpu_custom_call.1} parent=1 // loop_header
      %s13 = sphi 0, %s17
      %p14 = scmp.ge.s32.totalorder %s13, 4
      %s20 = sphi 0, %s32
      %s21 = sphi 0, %s28
      %s22 = sphi 0, %s20
      %s23 = sphi 0, %s21
      %s24 = sphi 0, %s22
      %s25 = sphi 0, %s23
      %s37 = sphi 0, %s39
      %s40 = sphi 0, %s37
      %s41 = sphi 0, %s40
      %s57 = sphi 0, %s41
      %s63 = sphi 0, %s65
      %s66 = sphi 0, %s63
      %s67 = sphi 0, %s66
      %s83 = sphi 0, %s67
    $region4: #{tpu_custom_call.1} parent=1 // loop_header_branch
      %16 = sbr.rel (%p14) target = $region8
    $region5: #{tpu_custom_call.1} parent=1 // loop_body
      %s18 = ssub.s32 %s13, 1
      %s19 = ssub.s32 %s13, 2
      %s26 = sadd.s32 1, %s21
      %p27 = scmp.ge.s32.totalorder %s26, 1
      %s28 = scalar_select %p27, 0, %s26
      %s29 = sadd.s32 1, %s20
      %s30 = scalar_select %p27, %s29, %s20
      %p31 = scmp.ge.s32.totalorder %s30, 2
      %s32 = scalar_select %p31, 0, %s30
      %s33 = sadd.s32 %s20, %s21
      %s34 = sadd.s32 %s32, %s28
      %s35 = ssub.s32 %s33, %s34
      %p36 = scmp.eq.s32.totalorder %s35, 0
      %s38 = sadd.s32 %s37, 1
      %s39 = scalar_select %p36, %s37, %s38
      %p42 = pneg %p36
      %p43 = scmp.eq.s32.totalorder %s13, 1
      %p44 = por %p42, %p43
      %p45 = scmp.ne.s32.totalorder %s37, %s40
      %p46 = scmp.eq.s32.totalorder %s13, 0
      %p47 = por %p45, %p46
      %p48 = scmp.ne.s32.totalorder %s37, %s40
      %p49 = scmp.eq.s32.totalorder %s18, 1
      %p50 = por %p48, %p49
      %p51 = scmp.ne.s32.totalorder %s40, %s41
      %p52 = scmp.eq.s32.totalorder %s18, 0
      %p53 = por %p51, %p52
      %p54 = scmp.ne.s32.totalorder %s40, %s41
      %p55 = scmp.eq.s32.totalorder %s19, 1
      %p56 = por %p54, %p55
      %p58 = scmp.ne.s32.totalorder %s41, %s57
      %p59 = scmp.eq.s32.totalorder %s19, 0
      %p60 = por %p58, %p59
      %s61 = ssub.s32 %s20, %s32
      %p62 = scmp.eq.s32.totalorder %s61, 0
      %s64 = sadd.s32 %s63, 1
      %s65 = scalar_select %p62, %s63, %s64
      %p68 = pneg %p62
      %p69 = scmp.eq.s32.totalorder %s13, 1
      %p70 = por %p68, %p69
      %p71 = scmp.ne.s32.totalorder %s63, %s66
      %p72 = scmp.eq.s32.totalorder %s13, 0
      %p73 = por %p71, %p72
      %p74 = scmp.ne.s32.totalorder %s63, %s66
      %p75 = scmp.eq.s32.totalorder %s18, 1
      %p76 = por %p74, %p75
      %p77 = scmp.ne.s32.totalorder %s66, %s67
      %p78 = scmp.eq.s32.totalorder %s18, 0
      %p79 = por %p77, %p78
      %p80 = scmp.ne.s32.totalorder %s66, %s67
      %p81 = scmp.eq.s32.totalorder %s19, 1
      %p82 = por %p80, %p81
      %p84 = scmp.ne.s32.totalorder %s67, %s83
      %p85 = scmp.eq.s32.totalorder %s19, 0
      %p86 = por %p84, %p85
      %p87 = scmp.le.s32.totalorder 1, %s13
      %p88 = scmp.lt.s32.totalorder %s13, 3
      %p89 = pnand %p87, %p88
      %p90 = pneg %p89
      // Predicated region
      $region9: #{tpu_custom_call.1} parent=5 // pred_check
        _
      $region10: #{tpu_custom_call.1} parent=5 // pred_check_branch
        %92 = sbr.rel (%p89) target = $region12
      $region11: #{tpu_custom_call.1} parent=5 // pred_region
        %s93 = ssub.s32 %s13, 1
      $region12: #{tpu_custom_call.1} parent=5 // pred_fallthru
        _
      %p94 = scmp.lt.s32.totalorder %s13, 2
      // Predicated region
      $region13: #{tpu_custom_call.1} parent=5 // pred_check
        %p95 = pneg %p94
      $region14: #{tpu_custom_call.1} parent=5 // pred_check_branch
        %97 = sbr.rel (%p95) target = $region16
      $region15: #{tpu_custom_call.1} parent=5 // pred_region
        // Predicated region
        $region17: #{tpu_custom_call.1} parent=15 // pred_check
          %p98 = pneg %p47
        $region18: #{tpu_custom_call.1} parent=15 // pred_check_branch
          %100 = sbr.rel (%p98) target = $region20
        $region19: #{tpu_custom_call.1} parent=15 // pred_region
          #allocation7 [shape = 'u32[6]{0}', space=smem, size = 0x18, scoped, tag = 'DMA stride descriptor']
          %s101 = sand.u32 %s37, 1
          %s102 = scalar_lea.sflag [#allocation3], %s101
          %s103 = sand.u32 %s37, 1
          %s104 = smul.addr %s103, 64
          %s105 = scalar_lea.vmem [#allocation2], %s104
          %s106 = sadd.s32 %s20, %s21
          %s107 = smul.u32 2, %s106
          %109 = vsyncadd %s102, 0
          %s110 = smul.addr %s107, 8
          %s111 = scalar_lea.hbm %s0, %s110
          %s113 = sshll.u32 1, 14
          %s114 = sxor.u32 4294967295, %s113
          %s116 = sld [smem:[#allocation0]]
          %s117 = sadd.s32 2, %s116
          %s119 = sshll.u32 7, 26
          %s120 = sxor.u32 4294967295, %s119
          %s121 = sand.u32 0, %s120
          %s122 = sshll.u32 %s117, 26
          %s123 = sor.u32 %s121, %s122
          %s124 = sshll.u32 %s111, 4
          %s125 = int_to_ptr.hbm [resolvable:$true] %s124
          %s126 = sshll.u32 %s105, 4
          %s127 = int_to_ptr.vmem [resolvable:$true] %s126
          %133 = sst [smem:[#allocation7]] 512
          %s134 = scalar_lea.smem [#allocation7], 1
          %135 = sst [smem:[%s134]] 256
          %s136 = scalar_lea.smem [#allocation7], 2
          %137 = sst [smem:[%s136]] 2
          %s138 = scalar_lea.smem [#allocation7], 3
          %139 = sst [smem:[%s138]] 128
          %s140 = scalar_lea.smem [#allocation7], 4
          %141 = sst [smem:[%s140]] 128
          %s142 = scalar_lea.smem [#allocation7], 5
          %143 = sst [smem:[%s142]] 8
          %145 = dma.general %s125, 1024, %s127, %s102, [#allocation6], [#allocation7], %s123, 0
        $region20: #{tpu_custom_call.1} parent=15 // pred_fallthru
          _
      $region16: #{tpu_custom_call.1} parent=5 // pred_fallthru
        _
      %p146 = scmp.le.s32.totalorder 1, %s13
      %p147 = scmp.lt.s32.totalorder %s13, 3
      %p148 = pnand %p146, %p147
      %p149 = pneg %p148
      // Predicated region
      $region21: #{tpu_custom_call.1} parent=5 // pred_check
        _
      $region22: #{tpu_custom_call.1} parent=5 // pred_check_branch
        %151 = sbr.rel (%p148) target = $region24
      $region23: #{tpu_custom_call.1} parent=5 // pred_region
        %s152 = ssub.s32 %s13, 1
        %s153 = sand.u32 %s40, 1
        %s154 = scalar_lea.sflag [#allocation3], %s153
        %s155 = sand.u32 %s40, 1
        %s156 = smul.addr %s155, 64
        %s157 = scalar_lea.vmem [#allocation2], %s156
        // Predicated region
        $region25: #{tpu_custom_call.1} parent=23 // pred_check
          %p158 = pneg %p53
        $region26: #{tpu_custom_call.1} parent=23 // pred_check_branch
          %160 = sbr.rel (%p158) target = $region28
        $region27: #{tpu_custom_call.1} parent=23 // pred_region
          %162 = dma.done %s154, 1024
        $region28: #{tpu_custom_call.1} parent=23 // pred_fallthru
          _
        %s163 = sand.u32 %s40, 1
        %s164 = scalar_lea.sflag [#allocation3], %s163
        %s165 = sand.u32 %s40, 1
        %s166 = smul.addr %s165, 64
        %s167 = scalar_lea.vmem [#allocation2], %s166
        %p168 = pneg %p53
        %p169 = pneg %p50
        %p170 = pneg %p79
        %p171 = pneg %p76
        %s172 = sand.u32 %s66, 1
        %s173 = scalar_lea.sflag [#allocation4], %s172
        %s174 = sand.u32 %s66, 1
        %s175 = smul.addr %s174, 8
        %s176 = scalar_lea.vmem [#allocation5], %s175
        %s177 = sadd.s32 %s22, %s23
        %s178 = smul.u32 2, %s177
        %p179 = scmp.eq.s32.totalorder %s23, 0
        // Predicated region
        $region29: #{tpu_custom_call.1} parent=23 // pred_check
          %p180 = pneg %p179
        $region30: #{tpu_custom_call.1} parent=23 // pred_check_branch
          %182 = sbr.rel (%p180) target = $region32
        $region31: #{tpu_custom_call.1} parent=23 // pred_region
          %183 = vst [vmem:[%s176] sm:$0xff] 0.0
        $region32: #{tpu_custom_call.1} parent=23 // pred_fallthru
          _
        %v184 = vld [vmem:[%s157] sm:$0xff]
        %v185 = vld [vmem:[%s157 + $0x8] sm:$0xff]
        %v186 = vld [vmem:[%s157 + $0x10] sm:$0xff]
        %v187 = vld [vmem:[%s157 + $0x18] sm:$0xff]
        %v188 = vld [vmem:[%s157 + $0x20] sm:$0xff]
        %v189 = vld [vmem:[%s157 + $0x28] sm:$0xff]
        %v190 = vld [vmem:[%s157 + $0x30] sm:$0xff]
        %v191 = vld [vmem:[%s157 + $0x38] sm:$0xff]
        %v192 = vadd.f32 %v184, 1e-08
        %v193 = vadd.f32 %v185, 1e-08
        %v194 = vadd.f32 %v186, 1e-08
        %v195 = vadd.f32 %v187, 1e-08
        %v196 = vadd.f32 %v188, 1e-08
        %v197 = vadd.f32 %v189, 1e-08
        %v198 = vadd.f32 %v190, 1e-08
        %v199 = vadd.f32 %v191, 1e-08
        %v200 = vlog2.pop %v192
        %v201 = vmul.f32 %v200, 0.6931472
        %v202 = vlog2.pop %v193
        %v203 = vmul.f32 %v202, 0.6931472
        %v204 = vlog2.pop %v194
        %v205 = vmul.f32 %v204, 0.6931472
        %v206 = vlog2.pop %v195
        %v207 = vmul.f32 %v206, 0.6931472
        %v208 = vlog2.pop %v196
        %v209 = vmul.f32 %v208, 0.6931472
        %v210 = vlog2.pop %v197
        %v211 = vmul.f32 %v210, 0.6931472
        %v212 = vlog2.pop %v198
        %v213 = vmul.f32 %v212, 0.6931472
        %v214 = vlog2.pop %v199
        %v215 = vmul.f32 %v214, 0.6931472
        %v216 = vmul.f32 %v192, %v201
        %v217 = vmul.f32 %v193, %v203
        %v218 = vmul.f32 %v194, %v205
        %v219 = vmul.f32 %v195, %v207
        %v220 = vmul.f32 %v196, %v209
        %v221 = vmul.f32 %v197, %v211
        %v222 = vmul.f32 %v198, %v213
        %v223 = vmul.f32 %v199, %v215
        %v224 = vadd.f32 %v216, %v218
        %v225 = vadd.f32 %v224, %v220
        %v226 = vadd.f32 %v225, %v222
        %v227 = vadd.f32 %v217, %v219
        %v228 = vadd.f32 %v227, %v221
        %v229 = vadd.f32 %v228, %v223
        %v230 = vadd.f32 %v192, %v194
        %v231 = vadd.f32 %v230, %v196
        %v232 = vadd.f32 %v231, %v198
        %v233 = vadd.f32 %v193, %v195
        %v234 = vadd.f32 %v233, %v197
        %v235 = vadd.f32 %v234, %v199
        %v236 = vadd.f32 %v201, %v205
        %v237 = vadd.f32 %v236, %v209
        %v238 = vadd.f32 %v237, %v213
        %v239 = vadd.f32 %v203, %v207
        %v240 = vadd.f32 %v239, %v211
        %v241 = vadd.f32 %v240, %v215
        %v242 = vmul.f32 %v226, 4.0
        %v243 = vmul.f32 %v229, 4.0
        %v244 = vmul.f32 %v232, %v238
        %v245 = vmul.f32 %v235, %v241
        %v246 = vsub.f32 %v242, %v244
        %v247 = vsub.f32 %v243, %v245
        %v248 = vadd.f32 %v246, %v247
        %v249 = vld [vmem:[%s176] sm:$0xff]
        %v250 = vadd.f32 %v249, %v248
        %251 = vst [vmem:[%s176] sm:$0xff] %v250
        %s252 = sand.u32 %s66, 1
        %s253 = scalar_lea.sflag [#allocation4], %s252
        %s254 = sand.u32 %s66, 1
        %s255 = smul.addr %s254, 8
        %s256 = scalar_lea.vmem [#allocation5], %s255
        // Predicated region
        $region33: #{tpu_custom_call.1} parent=23 // pred_check
          %p257 = pneg %p76
        $region34: #{tpu_custom_call.1} parent=23 // pred_check_branch
          %259 = sbr.rel (%p257) target = $region36
        $region35: #{tpu_custom_call.1} parent=23 // pred_region
          %261 = vsyncadd %s253, 0
          %s262 = smul.addr %s22, 8
          %s263 = scalar_lea.hbm %s1, %s262
          %s265 = sshll.u32 %s256, 4
          %s266 = int_to_ptr.vmem [resolvable:$true] %s265
          %s267 = sshll.u32 %s263, 4
          %s268 = int_to_ptr.hbm [resolvable:$true] %s267
          %270 = dma.vmem_to_hbm [thread:$0]  %s266, 128, %s268, %s253
        $region36: #{tpu_custom_call.1} parent=23 // pred_fallthru
          _
      $region24: #{tpu_custom_call.1} parent=5 // pred_fallthru
        _
      %p271 = scmp.le.s32.totalorder 2, %s13
      // Predicated region
      $region37: #{tpu_custom_call.1} parent=5 // pred_check
        %p272 = pneg %p271
      $region38: #{tpu_custom_call.1} parent=5 // pred_check_branch
        %274 = sbr.rel (%p272) target = $region40
      $region39: #{tpu_custom_call.1} parent=5 // pred_region
        %s275 = ssub.s32 %s13, 2
        // Predicated region
        $region41: #{tpu_custom_call.1} parent=39 // pred_check
          %p276 = pneg %p82
        $region42: #{tpu_custom_call.1} parent=39 // pred_check_branch
          %278 = sbr.rel (%p276) target = $region44
        $region43: #{tpu_custom_call.1} parent=39 // pred_region
          %s279 = sand.u32 %s67, 1
          %s280 = scalar_lea.sflag [#allocation4], %s279
          %s281 = sand.u32 %s67, 1
          %s282 = smul.addr %s281, 8
          %s283 = scalar_lea.vmem [#allocation5], %s282
          %285 = dma.done %s280, 128
        $region44: #{tpu_custom_call.1} parent=39 // pred_fallthru
          _
      $region40: #{tpu_custom_call.1} parent=5 // pred_fallthru
        _
    $region6: #{tpu_custom_call.1} parent=1 // loop_footer
      %s17 = sadd.s32 1, %s13
    $region7: #{tpu_custom_call.1} parent=1 // loop_footer_branch
      %12 = sbr.rel target = $region3
    $region8: #{tpu_custom_call.1} parent=1 // loop_exit
      _
    %286 = vsyncpa [#allocation3], 1
    %s287 = scalar_lea.sflag [#allocation3], 1
    %288 = vsyncpa %s287, 1
    %289 = vsyncpa [#allocation4], 1
    %s290 = scalar_lea.sflag [#allocation4], 1
    %291 = vsyncpa %s290, 1

</llo_original>
